<compile_context>
chip_gen: v7x
topology: tpu7x:2x2x1
jax: 0.10.0
libtpu: 0.0.40
codegen_flags: <defaults>
</compile_context>

<pallas_src>
import jax
import jax.numpy as jnp
from jax import lax
from jax.experimental import pallas as pl
from jax.experimental.pallas import tpu as pltpu


# ----------------------------------------------------------------------------
# Small helpers
# ----------------------------------------------------------------------------
def _round_up(a, m):
    return ((a + m - 1) // m) * m


def _pick_tn(coutp):
    if coutp <= 512:
        return coutp
    for t in (512, 256, 128):
        if coutp % t == 0:
            return t
    return 128


def _pick_tm(mp):
    for t in (512, 256, 128):
        if mp % t == 0:
            return t
    return 128


def _vmem_budget(block_bytes):
    # 2x for double buffering + headroom for in-kernel f32 temporaries.
    est = 2 * block_bytes + (12 << 20)
    return int(min(max(est, 16 << 20), 56 << 20))


# ----------------------------------------------------------------------------
# Kernel 1: direct 3x3 / stride-1 conv + folded BN (+residual) (+ReLU)
# ----------------------------------------------------------------------------
def _make_direct_conv_kernel(wp, m_out, wo, relu, mask_cols, with_residual):
    """Frame-layout direct conv.

    Input ref holds one image's zero-padded activation flattened to rows
    (R >= (Ho+2)*wp + tail pad, channels).  Output row m = h*wp + w; tap
    (kh, kw) reads input row m + kh*wp + kw.  Columns w >= wo are garbage
    (optionally masked to zero so the output can be re-used as a padded
    conv input).
    """

    def kernel(*refs):
        if with_residual:
            x_ref, w_ref, s_ref, b_ref, r_ref, o_ref = refs
        else:
            x_ref, w_ref, s_ref, b_ref, o_ref = refs

        acc = None
        for kh in range(3):
            for kw in range(3):
                d = kh * wp + kw
                a = x_ref[0, d:d + m_out, :]                        # (m_out, Cin)
                c = jnp.dot(a, w_ref[kh * 3 + kw],
                            preferred_element_type=jnp.float32)     # (m_out, tn)
                acc = c if acc is None else acc + c

        y = acc * s_ref[...] + b_ref[...]                           # folded BN
        if with_residual:
            y = y + r_ref[0, wp + 1:wp + 1 + m_out, :].astype(jnp.float32)
        if relu:
            y = jnp.maximum(y, 0.0)
        if mask_cols:
            # Zero the 2 garbage columns (w in {wo, wo+1}) of every output row.
            row = lax.broadcasted_iota(jnp.int32, y.shape, 0).astype(jnp.float32)
            q = jnp.floor((row + 0.5) * (1.0 / float(wp)))
            col = row - q * float(wp)
            y = jnp.where(col < float(wo) - 0.5, y, 0.0)
        o_ref[0] = y.astype(o_ref.dtype)

    return kernel


def _conv3x3_bn_direct(x_frame, w9, scale, shift, ho, wo, *, relu,
                       mask_cols=False, residual=None, out_dtype=jnp.bfloat16):
    """x_frame: (N, R, Cinp) bf16 frame layout; w9: (9, Cinp, Coutp) bf16.

    Returns (N, m_out, Coutp) with m_out = round_up(ho*(wo+2), 8); output row
    m = h*(wo+2) + w.
    """
    n, r, cinp = x_frame.shape
    coutp = w9.shape[-1]
    wp = wo + 2
    m_out = _round_up(ho * wp, 8)
    assert r >= 2 * wp + 2 + m_out, "frame is missing tail padding rows"
    tn = _pick_tn(coutp)

    in_specs = [
        pl.BlockSpec((1, r, cinp), lambda i, j: (i, 0, 0)),
        pl.BlockSpec((9, cinp, tn), lambda i, j: (0, 0, j)),
        pl.BlockSpec((1, tn), lambda i, j: (0, j)),
        pl.BlockSpec((1, tn), lambda i, j: (0, j)),
    ]
    args = [x_frame, w9, scale, shift]
    if residual is not None:
        in_specs.append(pl.BlockSpec((1, r, tn), lambda i, j: (i, 0, j)))
        args.append(residual)

    blk_bytes = (r * cinp * 2 + 9 * cinp * tn * 2 + 2 * tn * 4
                 + m_out * tn * (2 + 8))                 # out block + f32 temps
    if residual is not None:
        blk_bytes += r * tn * 2

    kernel = _make_direct_conv_kernel(wp, m_out, wo, relu, mask_cols,
                                      residual is not None)
    return pl.pallas_call(
        kernel,
        out_shape=jax.ShapeDtypeStruct((n, m_out, coutp), out_dtype),
        grid=(n, coutp // tn),
        in_specs=in_specs,
        out_specs=pl.BlockSpec((1, m_out, tn), lambda i, j: (i, 0, j)),
        compiler_params=pltpu.CompilerParams(
            dimension_semantics=("parallel", "parallel"),
            vmem_limit_bytes=_vmem_budget(blk_bytes),
        ),
    )(*args)


# ----------------------------------------------------------------------------
# Kernel 2: full-K matmul + folded BN (+ReLU)  (1x1 downsample, stride-2 conv1)
# ----------------------------------------------------------------------------
def _make_matmul_bn_kernel(relu):
    def kernel(p_ref, w_ref, s_ref, b_ref, o_ref):
        y = jnp.dot(p_ref[...], w_ref[...], preferred_element_type=jnp.float32)
        y = y * s_ref[...] + b_ref[...]
        if relu:
            y = jnp.maximum(y, 0.0)
        o_ref[...] = y.astype(o_ref.dtype)
    return kernel


def _matmul_bn(p, w, scale, shift, *, relu, out_dtype=jnp.bfloat16):
    m, k = p.shape
    coutp = w.shape[1]
    kp = _round_up(k, 128)
    mp = _round_up(m, 128)
    tm = _pick_tm(mp)
    tn = _pick_tn(coutp)
    pp = jnp.pad(p.astype(jnp.bfloat16), ((0, mp - m), (0, kp - k)))
    wpad = jnp.pad(w.astype(jnp.bfloat16), ((0, kp - k), (0, 0)))

    blk_bytes = tm * kp * 2 + kp * tn * 2 + tm * tn * (2 + 4) + 2 * tn * 4
    out = pl.pallas_call(
        _make_matmul_bn_kernel(relu),
        out_shape=jax.ShapeDtypeStruct((mp, coutp), out_dtype),
        grid=(mp // tm, coutp // tn),
        in_specs=[
            pl.BlockSpec((tm, kp), lambda i, j: (i, 0)),
            pl.BlockSpec((kp, tn), lambda i, j: (0, j)),
            pl.BlockSpec((1, tn), lambda i, j: (0, j)),
            pl.BlockSpec((1, tn), lambda i, j: (0, j)),
        ],
        out_specs=pl.BlockSpec((tm, tn), lambda i, j: (i, j)),
        compiler_params=pltpu.CompilerParams(
            dimension_semantics=("parallel", "parallel"),
            vmem_limit_bytes=_vmem_budget(blk_bytes),
        ),
    )(pp, wpad, scale, shift)
    return out[:m]


# ----------------------------------------------------------------------------
# Glue (plain JAX): BN folding, frame layout, im2col for the stride-2 conv1
# ----------------------------------------------------------------------------
def _fold_bn(gamma, beta, mean, var, eps=1e-5):
    scale = gamma / jnp.sqrt(var + eps)
    shift = beta - mean * scale
    return (scale.reshape(1, -1).astype(jnp.float32),
            shift.reshape(1, -1).astype(jnp.float32))


def _pad_cols(a, n):
    return jnp.pad(a, ((0, 0), (0, n - a.shape[1])))


def _to_frame(x_nhwc, r_pad, c_pad=None):
    """(N, Ho, Wo, C) -> zero-padded frame layout (N, r_pad, c_pad)."""
    n, ho, wo, c = x_nhwc.shape
    c_pad = c if c_pad is None else c_pad
    xf = jnp.pad(x_nhwc, ((0, 0), (1, 1), (1, 1), (0, c_pad - c)))
    xf = xf.reshape(n, (ho + 2) * (wo + 2), c_pad)
    return jnp.pad(xf, ((0, 0), (0, r_pad - xf.shape[1]), (0, 0)))


def _im2col(x_nhwc, ksize, stride, pad):
    n, h, w, c = x_nhwc.shape
    ho = (h + 2 * pad - ksize) // stride + 1
    wo = (w + 2 * pad - ksize) // stride + 1
    xp = jnp.pad(x_nhwc, ((0, 0), (pad, pad), (pad, pad), (0, 0)))
    cols = []
    for kh in range(ksize):
        for kw in range(ksize):
            cols.append(xp[:, kh:kh + stride * ho:stride,
                           kw:kw + stride * wo:stride, :])
    p = jnp.concatenate(cols, axis=-1)
    return p.reshape(n * ho * wo, ksize * ksize * c), (ho, wo)


# ----------------------------------------------------------------------------
# Parameters / forward / reference
# ----------------------------------------------------------------------------
def init_conv_block_params(key, in_channels, out_channels, stride):
    ks = jax.random.split(key, 16)

    def conv_w(k, cout, cin, kh, kw):
        bound = 1.0 / jnp.sqrt(cin * kh * kw)
        return jax.random.uniform(k, (cout, cin, kh, kw), jnp.float32,
                                  minval=-bound, maxval=bound)

    def bn_p(k0, k1, k2, k3, c):
        return dict(
            gamma=jax.random.uniform(k0, (c,), jnp.float32, 0.5, 1.5),
            beta=jax.random.uniform(k1, (c,), jnp.float32, -0.5, 0.5),
            mean=jax.random.uniform(k2, (c,), jnp.float32, -0.1, 0.1),
            var=jax.random.uniform(k3, (c,), jnp.float32, 0.5, 1.5),
        )

    params = {
        "w1": conv_w(ks[0], out_channels, in_channels, 3, 3),
        "bn1": bn_p(ks[1], ks[2], ks[3], ks[4], out_channels),
        "w2": conv_w(ks[5], out_channels, out_channels, 3, 3),
        "bn2": bn_p(ks[6], ks[7], ks[8], ks[9], out_channels),
    }
    if stride != 1 or in_channels != out_channels:
        params["wd"] = conv_w(ks[10], out_channels, in_channels, 1, 1)
        params["bnd"] = bn_p(ks[11], ks[12], ks[13], ks[14], out_channels)
    return params


def conv_block_forward(params, x_nchw, stride):
    n, cin, h, w = x_nchw.shape
    cout = params["w1"].shape[0]
    coutp = _round_up(cout, 128)
    has_ds = "wd" in params
    assert has_ds or stride == 1

    ho = (h + 2 - 3) // stride + 1
    wo = (w + 2 - 3) // stride + 1
    wp = wo + 2
    m_out = _round_up(ho * wp, 8)
    r_pad = _round_up(2 * wp + 2 + m_out, 8)

    x = jnp.transpose(x_nchw, (0, 2, 3, 1)).astype(jnp.bfloat16)      # NHWC

    s1, b1 = _fold_bn(**params["bn1"])
    s2, b2 = _fold_bn(**params["bn2"])
    s1, b1 = _pad_cols(s1, coutp), _pad_cols(b1, coutp)
    s2, b2 = _pad_cols(s2, coutp), _pad_cols(b2, coutp)

    # ---- conv1 + bn1 + relu --------------------------------------------------
    if stride == 1:
        # Direct kernel, no HBM im2col.  In the identity case the channels are
        # padded to coutp so the very same frame tensor doubles as the residual.
        cin_eff = coutp if not has_ds else _round_up(cin, 128)
        x_fr = _to_frame(x, r_pad, cin_eff)                           # (n, r_pad, cin_eff)
        w1 = jnp.transpose(params["w1"], (2, 3, 1, 0)).reshape(9, cin, cout)
        w1 = jnp.pad(w1, ((0, 0), (0, cin_eff - cin), (0, coutp - cout)))
        w1 = w1.astype(jnp.bfloat16)
        y1 = _conv3x3_bn_direct(x_fr, w1, s1, b1, ho, wo, relu=True,
                                mask_cols=True)                       # (n, m_out, coutp)
        # Re-embed conv1's (masked) output as conv2's zero-padded frame input:
        # output row m = h*wp + w maps to frame row m + wp + 1.
        n_valid = ho * wp - 2
        x2_fr = jnp.pad(y1[:, :n_valid],
                        ((0, 0), (wp + 1, r_pad - (wp + 1) - n_valid), (0, 0)))
    else:
        # TODO(synk): stride-2 conv1 still uses an HBM im2col (see header note).
        p1, _ = _im2col(x, 3, stride, 1)                              # (n*ho*wo, 9*cin)
        w1 = jnp.transpose(params["w1"], (2, 3, 1, 0)).reshape(9 * cin, cout)
        w1 = jnp.pad(w1, ((0, 0), (0, coutp - cout))).astype(jnp.bfloat16)
        y1 = _matmul_bn(p1, w1, s1, b1, relu=True)                    # (n*ho*wo, coutp)
        x2_fr = _to_frame(y1.reshape(n, ho, wo, coutp), r_pad)

    # ---- residual branch -----------------------------------------------------
    if has_ds:
        x_sub = x[:, ::stride, ::stride, :].reshape(n * ho * wo, cin)
        wd = jnp.transpose(params["wd"][:, :, 0, 0], (1, 0))          # (cin, cout)
        wd = jnp.pad(wd, ((0, 0), (0, coutp - cout))).astype(jnp.bfloat16)
        sd, bd = _fold_bn(**params["bnd"])
        sd, bd = _pad_cols(sd, coutp), _pad_cols(bd, coutp)
        rds = _matmul_bn(x_sub, wd, sd, bd, relu=False)               # (n*ho*wo, coutp)
        r_fr = _to_frame(rds.reshape(n, ho, wo, coutp), r_pad)
    else:
        r_fr = x_fr   # stride == 1 and cin == cout: frame layout, coutp channels

    # ---- conv2 + bn2 + residual add + relu (single fused kernel) -------------
    w2 = jnp.transpose(params["w2"], (2, 3, 1, 0)).reshape(9, cout, cout)
    w2 = jnp.pad(w2, ((0, 0), (0, coutp - cout), (0, coutp - cout)))
    w2 = w2.astype(jnp.bfloat16)
    out = _conv3x3_bn_direct(x2_fr, w2, s2, b2, ho, wo, relu=True,
                             residual=r_fr)                           # (n, m_out, coutp)

    # ---- extract valid positions once, fused with the NHWC->NCHW transpose ---
    out = out[:, :ho * wp].reshape(n, ho, wp, coutp)[:, :, :wo, :cout]
    return jnp.transpose(out.astype(jnp.float32), (0, 3, 1, 2))


# ----------------------------------------------------------------------------
# Pure-JAX reference (f32 everywhere; kernels use bf16 operands -> loose tol)
# ----------------------------------------------------------------------------
def conv_block_reference(params, x_nchw, stride):
    def conv(x, w, s, pad):
        return jax.lax.conv_general_dilated(
            x, w, (s, s), ((pad, pad), (pad, pad)),
            dimension_numbers=("NCHW", "OIHW", "NCHW"))

    def bn(x, p, eps=1e-5):
        g = p["gamma"].reshape(1, -1, 1, 1)
        b = p["beta"].reshape(1, -1, 1, 1)
        m = p["mean"].reshape(1, -1, 1, 1)
        v = p["var"].reshape(1, -1, 1, 1)
        return (x - m) / jnp.sqrt(v + eps) * g + b

    identity = x_nchw
    if "wd" in params:
        identity = bn(conv(x_nchw, params["wd"], stride, 0), params["bnd"])
    y = jax.nn.relu(bn(conv(x_nchw, params["w1"], stride, 1), params["bn1"]))
    y = bn(conv(y, params["w2"], 1, 1), params["bn2"])
    return jax.nn.relu(y + identity)


# ----------------------------------------------------------------------------
if __name__ == "__main__":
    key = jax.random.PRNGKey(0)
    kx, kp1, kp2 = jax.random.split(key, 3)

    # Case 1: downsample path (stride=2, channel expansion 4 -> 8)
    x = jax.random.normal(kx, (2, 4, 16, 16), jnp.float32)
    params_ds = init_conv_block_params(kp1, in_channels=4, out_channels=8, stride=2)
    out_ds = jax.block_until_ready(conv_block_forward(params_ds, x, stride=2))
    ref_ds = conv_block_reference(params_ds, x, stride=2)
    assert out_ds.shape == (2, 8, 8, 8)
    assert jnp.allclose(out_ds, ref_ds, atol=1e-1, rtol=5e-2), \
        f"max abs err = {jnp.max(jnp.abs(out_ds - ref_ds))}"

    # Case 2: plain residual path (stride=1, 4 -> 4)
    params_id = init_conv_block_params(kp2, in_channels=4, out_channels=4, stride=1)
    out_id = jax.block_until_ready(conv_block_forward(params_id, x, stride=1))
    ref_id = conv_block_reference(params_id, x, stride=1)
    assert out_id.shape == (2, 4, 16, 16)
    assert jnp.allclose(out_id, ref_id, atol=1e-1, rtol=5e-2), \
        f"max abs err = {jnp.max(jnp.abs(out_id - ref_id))}"

    print("KERNEL_OK")
</pallas_src>

<mosaic_0001>
module attributes {stable_mosaic.version = 11 : i64} {
  func.func @kernel(%arg0: i32, %arg1: i32, %arg2: memref<128x128xbf16, #tpu.memory_space<vmem>>, %arg3: memref<128x128xbf16, #tpu.memory_space<vmem>>, %arg4: memref<1x128xf32, #tpu.memory_space<vmem>>, %arg5: memref<1x128xf32, #tpu.memory_space<vmem>>, %arg6: memref<128x128xbf16, #tpu.memory_space<vmem>>) attributes {dimension_semantics = [#tpu.dimension_semantics<parallel>, #tpu.dimension_semantics<parallel>], iteration_bounds = array<i64: 1, 1>, scalar_prefetch = 0 : i64, scratch_operands = 0 : i64, tpu.core_type = #tpu.core_type<tc>, window_params = [{transform_indices = @transform_0, window_bounds = array<i64: 128, 128>}, {transform_indices = @transform_1, window_bounds = array<i64: 128, 128>}, {transform_indices = @transform_2, window_bounds = array<i64: 1, 128>}, {transform_indices = @transform_3, window_bounds = array<i64: 1, 128>}, {transform_indices = @transform_4, window_bounds = array<i64: 128, 128>}]} {
    %c0 = arith.constant 0 : index
    %c0_0 = arith.constant 0 : index
    %0 = vector.load %arg2[%c0, %c0_0] : memref<128x128xbf16, #tpu.memory_space<vmem>>, vector<128x128xbf16>
    %c0_1 = arith.constant 0 : index
    %c0_2 = arith.constant 0 : index
    %1 = vector.load %arg3[%c0_1, %c0_2] : memref<128x128xbf16, #tpu.memory_space<vmem>>, vector<128x128xbf16>
    %cst = arith.constant dense<0.000000e+00> : vector<128x128xf32>
    %2 = tpu.matmul %0, %1, %cst {dimension_numbers = #tpu.dot_dimension_numbers<[1], [0], [0], [1], [0, 0, 1, 1], [], []>} : vector<128x128xbf16>, vector<128x128xbf16>, vector<128x128xf32> -> vector<128x128xf32>
    %c0_3 = arith.constant 0 : index
    %c0_4 = arith.constant 0 : index
    %3 = vector.load %arg4[%c0_3, %c0_4] : memref<1x128xf32, #tpu.memory_space<vmem>>, vector<1x128xf32>
    %4 = vector.broadcast %3 : vector<1x128xf32> to vector<128x128xf32>
    %5 = arith.mulf %2, %4 : vector<128x128xf32>
    %c0_5 = arith.constant 0 : index
    %c0_6 = arith.constant 0 : index
    %6 = vector.load %arg5[%c0_5, %c0_6] : memref<1x128xf32, #tpu.memory_space<vmem>>, vector<1x128xf32>
    %7 = vector.broadcast %6 : vector<1x128xf32> to vector<128x128xf32>
    %8 = arith.addf %5, %7 : vector<128x128xf32>
    %cst_7 = arith.constant 0.000000e+00 : f32
    %9 = vector.broadcast %cst_7 : f32 to vector<128x128xf32>
    %10 = arith.maximumf %8, %9 : vector<128x128xf32>
    %11 = arith.truncf %10 : vector<128x128xf32> to vector<128x128xbf16>
    %c0_8 = arith.constant 0 : index
    %c0_9 = arith.constant 0 : index
    %12 = vector.load %arg6[%c0_8, %c0_9] : memref<128x128xbf16, #tpu.memory_space<vmem>>, vector<128x128xbf16>
    tpu.vector_store %arg6[%c0_8, %c0_9], %11 {strides = array<i32>} : memref<128x128xbf16, #tpu.memory_space<vmem>>, vector<128x128xbf16>,
    return
  }
  func.func @transform_0(%arg0: i32, %arg1: i32) -> (i32, i32) {
    %c0_i32 = arith.constant 0 : i32
    %c0_i32_0 = arith.constant 0 : i32
    return %arg0, %c0_i32 : i32, i32
  }
  func.func @transform_1(%arg0: i32, %arg1: i32) -> (i32, i32) {
    %c0_i32 = arith.constant 0 : i32
    %c0_i32_0 = arith.constant 0 : i32
    return %c0_i32, %arg1 : i32, i32
  }
  func.func @transform_2(%arg0: i32, %arg1: i32) -> (i32, i32) {
    %c0_i32 = arith.constant 0 : i32
    %c0_i32_0 = arith.constant 0 : i32
    return %c0_i32, %arg1 : i32, i32
  }
  func.func @transform_3(%arg0: i32, %arg1: i32) -> (i32, i32) {
    %c0_i32 = arith.constant 0 : i32
    %c0_i32_0 = arith.constant 0 : i32
    return %c0_i32, %arg1 : i32, i32
  }
  func.func @transform_4(%arg0: i32, %arg1: i32) -> (i32, i32) {
    %c0_i32 = arith.constant 0 : i32
    return %arg0, %arg1 : i32, i32
  }
}

</mosaic_0001>

<llo_original>
// kernel: tpu_custom_call.1
$region0: #{tpu_custom_call.1}
  #allocation0 [shape = 'u32[]', space=smem, size = 0x4, offset = 0x4, fixed_abs, tag = 'smem constant byte address 0x4 - core index']
  #allocation1 [shape = 'u32[144,128]{1,0:T(1,128)}', space=vmem, size = 0x12000, scoped, tag = 'internal scratch']
  %s0 = inlined_call_operand.hbm [shape: bf16[128,128], index: 0, kind: input, shape index: {}]
  %s1 = inlined_call_operand.hbm [shape: bf16[128,128], index: 1, kind: input, shape index: {}]
  %s2 = inlined_call_operand.vmem [shape: f32[1,128], index: 2, kind: input, shape index: {}]
  %s3 = inlined_call_operand.vmem [shape: f32[1,128], index: 3, kind: input, shape index: {}]
  %s4 = inlined_call_operand.hbm [shape: bf16[128,128], index: 4, kind: output, shape index: {}]
  %s5 = sld [smem:[#allocation0]]
  $region34: #{tpu_custom_call.1} parent=0
    _
  %s7 = ssub.s32 1, %s5
  %s8 = scalar_select 0, %s7, %s5
  $region1: #{tpu_custom_call.1} parent=0
    #allocation2 [shape = 'u8[32768]{0}', space=vmem, size = 0x8000, scoped, tag = 'input window, operand 0, single buffered']
    #allocation3 [shape = 's32[1]{0}', space=sflag, size = 0x4, scoped, tag = 'scoped memory for tpu_custom_call.1']
    #allocation4 [shape = 's32[1]{0}', space=sflag, size = 0x4, scoped, tag = 'scoped memory for tpu_custom_call.1']
    #allocation5 [shape = 'u8[32768]{0}', space=vmem, size = 0x8000, scoped, tag = 'input window, operand 1, single buffered']
    #allocation6 [shape = 's32[1]{0}', space=sflag, size = 0x4, scoped, tag = 'scoped memory for tpu_custom_call.1']
    #allocation7 [shape = 'u8[32768]{0}', space=vmem, size = 0x8000, scoped, tag = 'output window, operand 0, single buffered']
    %9 = vsyncpa [#allocation3], 0
    %10 = vsyncpa [#allocation6], 0
    %11 = vsyncpa [#allocation4], 0
    // Predicated region
    $region2: #{tpu_custom_call.1} parent=1 // pred_check
      _
    $region3: #{tpu_custom_call.1} parent=1 // pred_check_branch
      %13 = sbr.rel (0) target = $region5
    $region4: #{tpu_custom_call.1} parent=1 // pred_region
      %s15 = ssub.s32 1024, 1024
      %16 = vsyncadd [#allocation3], %s15
      %s17 = sshll.u32 [#allocation2], 4
      %s18 = int_to_ptr.vmem [resolvable:$true] %s17
      %23 = dma.hbm_to_vmem [thread:$0]  %s0, 1024, %s18, [#allocation3], 64, 64, 4
    $region5: #{tpu_custom_call.1} parent=1 // pred_fallthru
      _
    // Predicated region
    $region6: #{tpu_custom_call.1} parent=1 // pred_check
      _
    $region7: #{tpu_custom_call.1} parent=1 // pred_check_branch
      %25 = sbr.rel (0) target = $region9
    $region8: #{tpu_custom_call.1} parent=1 // pred_region
      %s27 = ssub.s32 1024, 1024
      %28 = vsyncadd [#allocation6], %s27
      %s29 = sshll.u32 [#allocation5], 4
      %s30 = int_to_ptr.vmem [resolvable:$true] %s29
      %35 = dma.hbm_to_vmem [thread:$0]  %s1, 1024, %s30, [#allocation6], 64, 64, 4
    $region9: #{tpu_custom_call.1} parent=1 // pred_fallthru
      _
    // Predicated region
    $region10: #{tpu_custom_call.1} parent=1 // pred_check
      _
    $region11: #{tpu_custom_call.1} parent=1 // pred_check_branch
      %37 = sbr.rel (0) target = $region13
    $region12: #{tpu_custom_call.1} parent=1 // pred_region
      _
    $region13: #{tpu_custom_call.1} parent=1 // pred_fallthru
      _
    // Predicated region
    $region14: #{tpu_custom_call.1} parent=1 // pred_check
      _
    $region15: #{tpu_custom_call.1} parent=1 // pred_check_branch
      %39 = sbr.rel (0) target = $region17
    $region16: #{tpu_custom_call.1} parent=1 // pred_region
      _
    $region17: #{tpu_custom_call.1} parent=1 // pred_fallthru
      _
    // Predicated region
    $region18: #{tpu_custom_call.1} parent=1 // pred_check
      _
    $region19: #{tpu_custom_call.1} parent=1 // pred_check_branch
      %41 = sbr.rel (0) target = $region21
    $region20: #{tpu_custom_call.1} parent=1 // pred_region
      %42 = dma.done [#allocation3], 1024
    $region21: #{tpu_custom_call.1} parent=1 // pred_fallthru
      _
    // Predicated region
    $region22: #{tpu_custom_call.1} parent=1 // pred_check
      _
    $region23: #{tpu_custom_call.1} parent=1 // pred_check_branch
      %44 = sbr.rel (0) target = $region25
    $region24: #{tpu_custom_call.1} parent=1 // pred_region
      %45 = dma.done [#allocation6], 1024
    $region25: #{tpu_custom_call.1} parent=1 // pred_fallthru
      _
    %v47 = vld [vmem:[#allocation2] sm:$0xf]
    %v48 = vld [vmem:[#allocation2 + $0x4] sm:$0xf]
    %v49 = vld [vmem:[#allocation2 + $0x8] sm:$0xf]
    %v50 = vld [vmem:[#allocation2 + $0xc] sm:$0xf]
    %v51 = vld [vmem:[#allocation2 + $0x10] sm:$0xf]
    %v52 = vld [vmem:[#allocation2 + $0x14] sm:$0xf]
    %v53 = vld [vmem:[#allocation2 + $0x18] sm:$0xf]
    %v54 = vld [vmem:[#allocation2 + $0x1c] sm:$0xf]
    %v55 = vld [vmem:[#allocation2 + $0x20] sm:$0xf]
    %v56 = vld [vmem:[#allocation2 + $0x24] sm:$0xf]
    %v57 = vld [vmem:[#allocation2 + $0x28] sm:$0xf]
    %v58 = vld [vmem:[#allocation2 + $0x2c] sm:$0xf]
    %v59 = vld [vmem:[#allocation2 + $0x30] sm:$0xf]
    %v60 = vld [vmem:[#allocation2 + $0x34] sm:$0xf]
    %v61 = vld [vmem:[#allocation2 + $0x38] sm:$0xf]
    %v62 = vld [vmem:[#allocation2 + $0x3c] sm:$0xf]
    %v63 = vld [vmem:[#allocation5] sm:$0xf]
    %v64 = vld [vmem:[#allocation5 + $0x4] sm:$0xf]
    %v65 = vld [vmem:[#allocation5 + $0x8] sm:$0xf]
    %v66 = vld [vmem:[#allocation5 + $0xc] sm:$0xf]
    %v67 = vld [vmem:[#allocation5 + $0x10] sm:$0xf]
    %v68 = vld [vmem:[#allocation5 + $0x14] sm:$0xf]
    %v69 = vld [vmem:[#allocation5 + $0x18] sm:$0xf]
    %v70 = vld [vmem:[#allocation5 + $0x1c] sm:$0xf]
    %v71 = vld [vmem:[#allocation5 + $0x20] sm:$0xf]
    %v72 = vld [vmem:[#allocation5 + $0x24] sm:$0xf]
    %v73 = vld [vmem:[#allocation5 + $0x28] sm:$0xf]
    %v74 = vld [vmem:[#allocation5 + $0x2c] sm:$0xf]
    %v75 = vld [vmem:[#allocation5 + $0x30] sm:$0xf]
    %v76 = vld [vmem:[#allocation5 + $0x34] sm:$0xf]
    %v77 = vld [vmem:[#allocation5 + $0x38] sm:$0xf]
    %v78 = vld [vmem:[#allocation5 + $0x3c] sm:$0xf]
    %v95 = vunpack.c.l.b16 %v47
    %v96 = vunpack.c.l.b16 %v48
    %v97 = vunpack.c.l.b16 %v49
    %v98 = vunpack.c.l.b16 %v50
    %v99 = vunpack.c.l.b16 %v51
    %v100 = vunpack.c.l.b16 %v52
    %v101 = vunpack.c.l.b16 %v53
    %v102 = vunpack.c.l.b16 %v54
    %v103 = vunpack.c.l.b16 %v55
    %v104 = vunpack.c.l.b16 %v56
    %v105 = vunpack.c.l.b16 %v57
    %v106 = vunpack.c.l.b16 %v58
    %v107 = vunpack.c.l.b16 %v59
    %v108 = vunpack.c.l.b16 %v60
    %v109 = vunpack.c.l.b16 %v61
    %v110 = vunpack.c.l.b16 %v62
    %v111 = vpack.c.b16 %v96, %v95
    %v112 = vpack.c.b16 %v98, %v97
    %v113 = vpack.c.b16 %v100, %v99
    %v114 = vpack.c.b16 %v102, %v101
    %v115 = vpack.c.b16 %v104, %v103
    %v116 = vpack.c.b16 %v106, %v105
    %v117 = vpack.c.b16 %v108, %v107
    %v118 = vpack.c.b16 %v110, %v109
    %v143 = vunpack.c.l.b16 %v63
    %v144 = vunpack.c.l.b16 %v64
    %v145 = vunpack.c.l.b16 %v65
    %v146 = vunpack.c.l.b16 %v66
    %v147 = vunpack.c.l.b16 %v67
    %v148 = vunpack.c.l.b16 %v68
    %v149 = vunpack.c.l.b16 %v69
    %v150 = vunpack.c.l.b16 %v70
    %v151 = vunpack.c.l.b16 %v71
    %v152 = vunpack.c.l.b16 %v72
    %v153 = vunpack.c.l.b16 %v73
    %v154 = vunpack.c.l.b16 %v74
    %v155 = vunpack.c.l.b16 %v75
    %v156 = vunpack.c.l.b16 %v76
    %v157 = vunpack.c.l.b16 %v77
    %v158 = vunpack.c.l.b16 %v78
    %v159 = vpack.c.b16 %v144, %v143
    %v160 = vpack.c.b16 %v146, %v145
    %v161 = vpack.c.b16 %v148, %v147
    %v162 = vpack.c.b16 %v150, %v149
    %v163 = vpack.c.b16 %v152, %v151
    %v164 = vpack.c.b16 %v154, %v153
    %v165 = vpack.c.b16 %v156, %v155
    %v166 = vpack.c.b16 %v158, %v157
    %175 = vmatprep.subr.bf16.mxu0 0
    %176 = vmatpush1.bf16.msra.mxu0 %v159
    %177 = vmatprep.subr.bf16.mxu0 0
    %178 = vmatpush1.bf16.msra.mxu0 %v160
    %179 = vmatprep.subr.bf16.mxu0 0
    %180 = vmatpush1.bf16.msra.mxu0 %v161
    %181 = vmatprep.subr.bf16.mxu0 0
    %182 = vmatpush1.bf16.msra.mxu0 %v162
    %183 = vmatprep.subr.bf16.mxu0 0
    %184 = vmatpush1.bf16.msra.mxu0 %v163
    %185 = vmatprep.subr.bf16.mxu0 0
    %186 = vmatpush1.bf16.msra.mxu0 %v164
    %187 = vmatprep.subr.bf16.mxu0 0
    %188 = vmatpush1.bf16.msra.mxu0 %v165
    %189 = vmatprep.subr.bf16.mxu0 0
    %190 = vmatpush1.bf16.msra.mxu0 %v166
    %191 = vmatprep.subr.bf16.mxu0 0
    %192 = vmatpush1.bf16.msra.mxu0 0
    %193 = vmatprep.subr.bf16.mxu0 0
    %194 = vmatpush1.bf16.msra.mxu0 0
    %195 = vmatprep.subr.bf16.mxu0 0
    %196 = vmatpush1.bf16.msra.mxu0 0
    %197 = vmatprep.subr.bf16.mxu0 0
    %198 = vmatpush1.bf16.msra.mxu0 0
    %199 = vmatprep.subr.bf16.mxu0 0
    %200 = vmatpush1.bf16.msra.mxu0 0
    %201 = vmatprep.subr.bf16.mxu0 0
    %202 = vmatpush1.bf16.msra.mxu0 0
    %203 = vmatprep.subr.bf16.mxu0 0
    %204 = vmatpush1.bf16.msra.mxu0 0
    %205 = vmatprep.subr.bf16.mxu0 0
    %206 = vmatpush1.bf16.msra.mxu0 0
    %207 = vmatprep.mubr.bf16.mxu0 0
    %208 = vmatmul.mubr.bf16.gmra.mrb[0].mxu0 %v111
    %v209 = vpop.f32.mrb[0].mxu0
    %v210 = vadd.f32 0.0, %v209
    %v211 = vpop.f32.mrb[0].mxu0
    %v212 = vpop.f32.mrb[0].mxu0
    %v213 = vadd.f32 0.0, %v212
    %v214 = vpop.f32.mrb[0].mxu0
    %215 = vmatprep.mubr.bf16.mxu0 0
    %216 = vmatmul.mubr.bf16.gmra.mrb[0].mxu0 %v112
    %v217 = vpop.f32.mrb[0].mxu0
    %v218 = vadd.f32 0.0, %v217
    %v219 = vpop.f32.mrb[0].mxu0
    %v220 = vpop.f32.mrb[0].mxu0
    %v221 = vadd.f32 0.0, %v220
    %v222 = vpop.f32.mrb[0].mxu0
    %223 = vmatprep.mubr.bf16.mxu0 0
    %224 = vmatmul.mubr.bf16.gmra.mrb[0].mxu0 %v113
    %v225 = vpop.f32.mrb[0].mxu0
    %v226 = vadd.f32 0.0, %v225
    %v227 = vpop.f32.mrb[0].mxu0
    %v228 = vpop.f32.mrb[0].mxu0
    %v229 = vadd.f32 0.0, %v228
    %v230 = vpop.f32.mrb[0].mxu0
    %231 = vmatprep.mubr.bf16.mxu0 0
    %232 = vmatmul.mubr.bf16.gmra.mrb[0].mxu0 %v114
    %v233 = vpop.f32.mrb[0].mxu0
    %v234 = vadd.f32 0.0, %v233
    %v235 = vpop.f32.mrb[0].mxu0
    %v236 = vpop.f32.mrb[0].mxu0
    %v237 = vadd.f32 0.0, %v236
    %v238 = vpop.f32.mrb[0].mxu0
    %239 = vmatprep.mubr.bf16.mxu0 0
    %240 = vmatmul.mubr.bf16.gmra.mrb[0].mxu0 %v115
    %v241 = vpop.f32.mrb[0].mxu0
    %v242 = vadd.f32 0.0, %v241
    %v243 = vpop.f32.mrb[0].mxu0
    %v244 = vpop.f32.mrb[0].mxu0
    %v245 = vadd.f32 0.0, %v244
    %v246 = vpop.f32.mrb[0].mxu0
    %247 = vmatprep.mubr.bf16.mxu0 0
    %248 = vmatmul.mubr.bf16.gmra.mrb[0].mxu0 %v116
    %v249 = vpop.f32.mrb[0].mxu0
    %v250 = vadd.f32 0.0, %v249
    %v251 = vpop.f32.mrb[0].mxu0
    %v252 = vpop.f32.mrb[0].mxu0
    %v253 = vadd.f32 0.0, %v252
    %v254 = vpop.f32.mrb[0].mxu0
    %255 = vmatprep.mubr.bf16.mxu0 0
    %256 = vmatmul.mubr.bf16.gmra.mrb[0].mxu0 %v117
    %v257 = vpop.f32.mrb[0].mxu0
    %v258 = vadd.f32 0.0, %v257
    %v259 = vpop.f32.mrb[0].mxu0
    %v260 = vpop.f32.mrb[0].mxu0
    %v261 = vadd.f32 0.0, %v260
    %v262 = vpop.f32.mrb[0].mxu0
    %263 = vmatprep.mubr.bf16.mxu0 0
    %264 = vmatmul.mubr.bf16.gmra.mrb[0].mxu0 %v118
    %v265 = vpop.f32.mrb[0].mxu0
    %v266 = vadd.f32 0.0, %v265
    %v267 = vpop.f32.mrb[0].mxu0
    %v268 = vpop.f32.mrb[0].mxu0
    %v269 = vadd.f32 0.0, %v268
    %v270 = vpop.f32.mrb[0].mxu0
    %271 = vdwg.mxu0
    %v272 = vld [vmem:[%s2] sm:$0x1]
    %v274 = vlaneseq
    %v275 = vshrl.u32 %v274, 7
    %v276 = vsub.s32 0, %v275
    %v277 = vrot.slane %v272, %v276
    %v279 = vmul.f32 %v210, %v277
    %v280 = vmul.f32 %v213, %v277
    %v281 = vmul.f32 %v218, %v277
    %v282 = vmul.f32 %v221, %v277
    %v283 = vmul.f32 %v226, %v277
    %v284 = vmul.f32 %v229, %v277
    %v285 = vmul.f32 %v234, %v277
    %v286 = vmul.f32 %v237, %v277
    %v287 = vmul.f32 %v242, %v277
    %v288 = vmul.f32 %v245, %v277
    %v289 = vmul.f32 %v250, %v277
    %v290 = vmul.f32 %v253, %v277
    %v291 = vmul.f32 %v258, %v277
    %v292 = vmul.f32 %v261, %v277
    %v293 = vmul.f32 %v266, %v277
    %v294 = vmul.f32 %v269, %v277
    %v295 = vld [vmem:[%s3] sm:$0x1]
    %v297 = vlaneseq
    %v298 = vshrl.u32 %v297, 7
    %v299 = vsub.s32 0, %v298
    %v300 = vrot.slane %v295, %v299
    %v302 = vadd.f32 %v279, %v300
    %v303 = vadd.f32 %v280, %v300
    %v304 = vadd.f32 %v281, %v300
    %v305 = vadd.f32 %v282, %v300
    %v306 = vadd.f32 %v283, %v300
    %v307 = vadd.f32 %v284, %v300
    %v308 = vadd.f32 %v285, %v300
    %v309 = vadd.f32 %v286, %v300
    %v310 = vadd.f32 %v287, %v300
    %v311 = vadd.f32 %v288, %v300
    %v312 = vadd.f32 %v289, %v300
    %v313 = vadd.f32 %v290, %v300
    %v314 = vadd.f32 %v291, %v300
    %v315 = vadd.f32 %v292, %v300
    %v316 = vadd.f32 %v293, %v300
    %v317 = vadd.f32 %v294, %v300
    %v318 = vmax.f32 %v302, 0.0
    %v319 = vmax.f32 %v303, 0.0
    %v320 = vmax.f32 %v304, 0.0
    %v321 = vmax.f32 %v305, 0.0
    %v322 = vmax.f32 %v306, 0.0
    %v323 = vmax.f32 %v307, 0.0
    %v324 = vmax.f32 %v308, 0.0
    %v325 = vmax.f32 %v309, 0.0
    %v326 = vmax.f32 %v310, 0.0
    %v327 = vmax.f32 %v311, 0.0
    %v328 = vmax.f32 %v312, 0.0
    %v329 = vmax.f32 %v313, 0.0
    %v330 = vmax.f32 %v314, 0.0
    %v331 = vmax.f32 %v315, 0.0
    %v332 = vmax.f32 %v316, 0.0
    %v333 = vmax.f32 %v317, 0.0
    %v334 = vpack.c.bf16 %v319, %v318
    %v335 = vpack.c.bf16 %v321, %v320
    %v336 = vpack.c.bf16 %v323, %v322
    %v337 = vpack.c.bf16 %v325, %v324
    %v338 = vpack.c.bf16 %v327, %v326
    %v339 = vpack.c.bf16 %v329, %v328
    %v340 = vpack.c.bf16 %v331, %v330
    %v341 = vpack.c.bf16 %v333, %v332
    %v350 = vunpack.c.l.b16 %v334
    %v351 = vunpack.c.h.b16 %v334
    %v352 = vunpack.c.l.b16 %v335
    %v353 = vunpack.c.h.b16 %v335
    %v354 = vunpack.c.l.b16 %v336
    %v355 = vunpack.c.h.b16 %v336
    %v356 = vunpack.c.l.b16 %v337
    %v357 = vunpack.c.h.b16 %v337
    %v358 = vunpack.c.l.b16 %v338
    %v359 = vunpack.c.h.b16 %v338
    %v360 = vunpack.c.l.b16 %v339
    %v361 = vunpack.c.h.b16 %v339
    %v362 = vunpack.c.l.b16 %v340
    %v363 = vunpack.c.h.b16 %v340
    %v364 = vunpack.c.l.b16 %v341
    %v365 = vunpack.c.h.b16 %v341
    %v366 = vpack.c.b16 %v350, %v350
    %v367 = vpack.c.b16 %v351, %v351
    %v368 = vpack.c.b16 %v352, %v352
    %v369 = vpack.c.b16 %v353, %v353
    %v370 = vpack.c.b16 %v354, %v354
    %v371 = vpack.c.b16 %v355, %v355
    %v372 = vpack.c.b16 %v356, %v356
    %v373 = vpack.c.b16 %v357, %v357
    %v374 = vpack.c.b16 %v358, %v358
    %v375 = vpack.c.b16 %v359, %v359
    %v376 = vpack.c.b16 %v360, %v360
    %v377 = vpack.c.b16 %v361, %v361
    %v378 = vpack.c.b16 %v362, %v362
    %v379 = vpack.c.b16 %v363, %v363
    %v380 = vpack.c.b16 %v364, %v364
    %v381 = vpack.c.b16 %v365, %v365
    %398 = vst [vmem:[#allocation7] sm:$0xf] %v366
    %399 = vst [vmem:[#allocation7 + $0x4] sm:$0xf] %v367
    %400 = vst [vmem:[#allocation7 + $0x8] sm:$0xf] %v368
    %401 = vst [vmem:[#allocation7 + $0xc] sm:$0xf] %v369
    %402 = vst [vmem:[#allocation7 + $0x10] sm:$0xf] %v370
    %403 = vst [vmem:[#allocation7 + $0x14] sm:$0xf] %v371
    %404 = vst [vmem:[#allocation7 + $0x18] sm:$0xf] %v372
    %405 = vst [vmem:[#allocation7 + $0x1c] sm:$0xf] %v373
    %406 = vst [vmem:[#allocation7 + $0x20] sm:$0xf] %v374
    %407 = vst [vmem:[#allocation7 + $0x24] sm:$0xf] %v375
    %408 = vst [vmem:[#allocation7 + $0x28] sm:$0xf] %v376
    %409 = vst [vmem:[#allocation7 + $0x2c] sm:$0xf] %v377
    %410 = vst [vmem:[#allocation7 + $0x30] sm:$0xf] %v378
    %411 = vst [vmem:[#allocation7 + $0x34] sm:$0xf] %v379
    %412 = vst [vmem:[#allocation7 + $0x38] sm:$0xf] %v380
    %413 = vst [vmem:[#allocation7 + $0x3c] sm:$0xf] %v381
    // Predicated region
    $region26: #{tpu_custom_call.1} parent=1 // pred_check
      _
    $region27: #{tpu_custom_call.1} parent=1 // pred_check_branch
      %415 = sbr.rel (0) target = $region29
    $region28: #{tpu_custom_call.1} parent=1 // pred_region
      %s417 = ssub.s32 1024, 1024
      %418 = vsyncadd [#allocation4], %s417
      %s419 = sshll.u32 [#allocation7], 4
      %s420 = int_to_ptr.vmem [resolvable:$true] %s419
      %425 = dma.vmem_to_hbm [thread:$0]  %s420, 1024, %s4, [#allocation4], 64, 64, 4
    $region29: #{tpu_custom_call.1} parent=1 // pred_fallthru
      _
    // Predicated region
    $region30: #{tpu_custom_call.1} parent=1 // pred_check
      _
    $region31: #{tpu_custom_call.1} parent=1 // pred_check_branch
      %427 = sbr.rel (0) target = $region33
    $region32: #{tpu_custom_call.1} parent=1 // pred_region
      %428 = dma.done [#allocation4], 1024
    $region33: #{tpu_custom_call.1} parent=1 // pred_fallthru
      _
    %429 = vsyncpa [#allocation3], 1
    %430 = vsyncpa [#allocation6], 1
    %431 = vsyncpa [#allocation4], 1

</llo_original>
